<compile_context>
chip_gen: v7x
topology: tpu7x:2x2x1
jax: 0.10.0
libtpu: 0.0.40
codegen_flags: <defaults>
</compile_context>

<pallas_src>
import jax
import jax.numpy as jnp
from jax.experimental import pallas as pl
from jax.experimental.pallas import tpu as pltpu

NEG_SLOPE = 0.01
H1, H2, H3 = 32, 64, 32      # hidden widths of the 4-layer stack (in=1, out=1)


# ----------------------------------------------------------------------------
# helpers
# ----------------------------------------------------------------------------
def _vmem_limit(need_bytes):
    return int(min(128 << 20, max(need_bytes, 32 << 20)))


def _fused_vmem_limit(num_nodes, num_edges, folded):
    op_bytes = 2 * num_nodes * num_nodes if folded else 4 * num_nodes * num_edges
    act_bytes = 4 * num_nodes * (1 + 2 * (H1 + H2 + H3))     # x + live activations
    small = 64 * 128 * 2 + 8 * 128 * 4
    return _vmem_limit(op_bytes + act_bytes + small + (4 << 20))


def _tiled_vmem_limit(tm, n, cin, cout):
    need = 2 * (2 * tm * n) + 4 * n * cin + 2 * (4 * tm * cout) + (4 << 20)
    return _vmem_limit(need)


def _pick_mode(num_nodes, num_edges):
    # fold M only when the hypergraph is dense enough (E >~ N/2); otherwise the
    # unfolded two-matmul agg is both cheaper (fewer MXU streams over the big
    # operator) and much smaller in VMEM (2*2*N*E vs 2*N^2 bytes).
    if 2 * num_edges < num_nodes:
        return "fused_unfolded"
    folded_bytes = 2 * num_nodes * num_nodes
    return "fused_folded" if folded_bytes <= (48 << 20) else "tiled_folded"


def _pick_row_tile(n, requested):
    tm = max(8, min(requested, n))
    while tm > 8 and (n % tm or tm % 8):
        tm -= 8
    if n % tm:
        tm = n
    return tm


def _build_operator_factors(edge_index, num_nodes, num_edges):
    """Dense incidence factors:  Hd = D^-1 H  (N,E),  Htb = B^-1 H^T  (E,N)."""
    node_idx, edge_idx = edge_index[0], edge_index[1]
    # scatter-ADD (not set): duplicate (node, hyperedge) incidences are counted
    # in both the degrees and the aggregation, matching PyG's scatter semantics.
    H = jnp.zeros((num_nodes, num_edges), jnp.float32).at[node_idx, edge_idx].add(1.0)
    deg_n = H.sum(axis=1, keepdims=True)             # D  (N, 1)
    deg_e = H.sum(axis=0, keepdims=True)             # B  (1, E)
    dinv = jnp.where(deg_n > 0, 1.0 / deg_n, 0.0)
    binv = jnp.where(deg_e > 0, 1.0 / deg_e, 0.0)
    Hd = dinv * H                                    # (N, E)
    Htb = (binv * H).T                               # (E, N)
    return Hd, Htb, (H, dinv, binv)


def _pack_params(params):
    """Pack the 8 param tensors into one bf16 MXU buffer + one f32 small buffer."""
    w1, b1, w2, b2, w3, b3, w4, b4 = params
    p = jnp.zeros((8, 128), jnp.float32)
    p = p.at[0, 0:H1].set(w1[0])                     # w1 row      (1,32)
    p = p.at[1, 0:H1].set(b1[0])
    p = p.at[2, 0:H2].set(b2[0])
    p = p.at[3, 0:H3].set(b3[0])
    p = p.at[4, 0:H3].set(w4[:, 0])                  # w4^T row    (1,32)
    p = p.at[5, 0:1].set(b4[0])
    w = jnp.zeros((64, 128), jnp.float32)
    w = w.at[0:H1, 0:H2].set(w2)
    w = w.at[0:H2, H2:H2 + H3].set(w3)
    return w.astype(jnp.bfloat16), p


# ----------------------------------------------------------------------------
# fused single-call kernel (whole operator VMEM-resident)
# ----------------------------------------------------------------------------
def _layer_stack(x, agg, w_ref, p_ref, out_ref):
    w1 = p_ref[0:1, 0:H1]
    b1 = p_ref[1:2, 0:H1]
    b2 = p_ref[2:3, 0:H2]
    b3 = p_ref[3:4, 0:H3]
    w4 = p_ref[4:5, 0:H3]
    b4 = p_ref[5:6, 0:1]
    w2 = w_ref[0:H1, 0:H2]
    w3 = w_ref[0:H2, H2:H2 + H3]

    def lrelu(v):
        return jnp.maximum(v, NEG_SLOPE * v)         # vmul + vmax (no cmp/select)

    # layer 1: Cin = 1  ->  x @ W1 is a broadcast outer product on the VPU
    h = lrelu(agg(x * w1) + b1)
    # F.dropout(training=False) -> identity (eval mode)
    h = lrelu(agg(jnp.dot(h.astype(jnp.bfloat16), w2,
                          preferred_element_type=jnp.float32)) + b2)
    h = lrelu(agg(jnp.dot(h.astype(jnp.bfloat16), w3,
                          preferred_element_type=jnp.float32)) + b3)
    # layer 4 re-associated:  delta = (agg(h3)) @ w4 + b4  (no padded 128-wide
    # bf16 intermediate; the final contraction is a cheap lane-reduce)
    t = agg(h)                                       # (N, 32) f32
    out_ref[...] = jnp.sum(t * w4, axis=-1, keepdims=True) + b4


def _make_fused_kernel(folded):
    if folded:
        def kernel(x_ref, m_ref, w_ref, p_ref, out_ref):
            m = m_ref[...]                           # (N, N) bf16

            def agg(v):                              # M @ v : one MXU stream
                return jnp.dot(m, v.astype(jnp.bfloat16),
                               preferred_element_type=jnp.float32)

            _layer_stack(x_ref[...], agg, w_ref, p_ref, out_ref)
    else:
        def kernel(x_ref, hd_ref, htb_ref, w_ref, p_ref, out_ref):
            hd = hd_ref[...]                         # (N, E) bf16  = D^-1 H
            htb = htb_ref[...]                       # (E, N) bf16  = B^-1 H^T

            def agg(v):                              # Hd @ (Htb @ v) : 2 small streams
                e = jnp.dot(htb, v.astype(jnp.bfloat16),
                            preferred_element_type=jnp.float32)
                return jnp.dot(hd, e.astype(jnp.bfloat16),
                               preferred_element_type=jnp.float32)

            _layer_stack(x_ref[...], agg, w_ref, p_ref, out_ref)
    return kernel


def _make_fused_delta(num_nodes, num_edges, folded):
    n_in = 4 if folded else 5
    # TODO(synk): hide the one-shot operator HBM->VMEM DMA behind layer-1 compute
    # (memory_space=pl.ANY + manual double-buffered row-chunk copies); ~5-10% on
    # v5e/v6e for the folded path, less on v7x.
    call = pl.pallas_call(
        _make_fused_kernel(folded),
        out_shape=jax.ShapeDtypeStruct((num_nodes, 1), jnp.float32),
        in_specs=[pl.BlockSpec(memory_space=pltpu.MemorySpace.VMEM)] * n_in,
        out_specs=pl.BlockSpec(memory_space=pltpu.MemorySpace.VMEM),
        compiler_params=pltpu.CompilerParams(
            vmem_limit_bytes=_fused_vmem_limit(num_nodes, num_edges, folded)),
    )
    return lambda x, *bufs: call(x, *bufs)


# ----------------------------------------------------------------------------
# row-tiled per-layer kernels (folded operator, grid over row tiles of M)
# ----------------------------------------------------------------------------
def _make_tiled_layer_kernel(mode):
    # mode: "first" (Cin=1, VPU outer product), "mid" (MXU h@W), "last" (agg then w4)
    def kernel(h_ref, w_ref, b_ref, m_ref, out_ref):
        h = h_ref[...]
        if mode == "first":
            xw = h * w_ref[...]                      # (N,1)*(1,32) on the VPU
        elif mode == "mid":
            xw = jnp.dot(h.astype(jnp.bfloat16), w_ref[...],
                         preferred_element_type=jnp.float32)
        else:                                        # "last": aggregate h3 directly
            xw = h
        agg = jnp.dot(m_ref[...], xw.astype(jnp.bfloat16),
                      preferred_element_type=jnp.float32)
        if mode == "last":
            out_ref[...] = (jnp.sum(agg * w_ref[...], axis=-1, keepdims=True)
                            + b_ref[...])
        else:
            v = agg + b_ref[...]
            out_ref[...] = jnp.maximum(v, NEG_SLOPE * v)
    return kernel


def _tiled_layer(h, w, b, m, tm, mode):
    n = m.shape[0]
    cout = 1 if mode == "last" else b.shape[1]
    grid = (n // tm,)
    return pl.pallas_call(
        _make_tiled_layer_kernel(mode),
        out_shape=jax.ShapeDtypeStruct((n, cout), jnp.float32),
        grid=grid,
        in_specs=[
            pl.BlockSpec(h.shape, lambda i: (0, 0)),   # full h, VMEM-resident
            pl.BlockSpec(w.shape, lambda i: (0, 0)),   # constant index_map: no re-DMA
            pl.BlockSpec(b.shape, lambda i: (0, 0)),
            pl.BlockSpec((tm, n), lambda i: (i, 0)),   # row tile of folded M
        ],
        out_specs=pl.BlockSpec((tm, cout), lambda i: (i, 0)),
        compiler_params=pltpu.CompilerParams(
            dimension_semantics=("parallel",),         # shard row tiles across TCs (v7x)
            vmem_limit_bytes=_tiled_vmem_limit(tm, n, h.shape[1], cout)),
    )(h, w, b, m)


# ----------------------------------------------------------------------------
# factory: amortizes operator construction / packing across forward calls
# ----------------------------------------------------------------------------
def make_hypergraph_resnet_forward(edge_index, num_nodes, num_edges,
                                   original_node_ranges, params,
                                   mode=None, row_tile=512):
    """Build the graph operator + packed params ONCE; return a jitted forward(x)."""
    Hd, Htb, _ = _build_operator_factors(edge_index, num_nodes, num_edges)
    if mode is None:
        mode = _pick_mode(num_nodes, num_edges)

    # static node-range selection -> one gather index (host-side glue, built once)
    sel = jnp.concatenate([jnp.arange(s, e, dtype=jnp.int32)
                           for s, e in original_node_ranges], axis=0)

    if mode == "fused_unfolded":
        w_buf, p_buf = _pack_params(params)
        buffers = (Hd.astype(jnp.bfloat16), Htb.astype(jnp.bfloat16), w_buf, p_buf)
        delta_fn = _make_fused_delta(num_nodes, num_edges, folded=False)
    elif mode == "fused_folded":
        w_buf, p_buf = _pack_params(params)
        M = (Hd @ Htb).astype(jnp.bfloat16)          # fold once, cached
        buffers = (M, w_buf, p_buf)
        delta_fn = _make_fused_delta(num_nodes, num_edges, folded=True)
    elif mode == "tiled_folded":
        w1, b1, w2, b2, w3, b3, w4, b4 = params
        M = (Hd @ Htb).astype(jnp.bfloat16)
        tm = _pick_row_tile(num_nodes, row_tile)
        buffers = (M, w1, b1, w2.astype(jnp.bfloat16), b2,
                   w3.astype(jnp.bfloat16), b3, jnp.transpose(w4), b4)

        def delta_fn(x, M, w1_, b1_, w2b, b2_, w3b, b3_, w4r, b4_):
            h = _tiled_layer(x, w1_, b1_, M, tm, "first")
            h = _tiled_layer(h, w2b, b2_, M, tm, "mid")
            h = _tiled_layer(h, w3b, b3_, M, tm, "mid")
            return _tiled_layer(h, w4r, b4_, M, tm, "last")
        # TODO(synk): add a two-stage (edge-gather / node-scatter) row-tiled pipeline
        # for the UNFOLDED operator so very large N with E << N also shards across
        # v7x's two TensorCores without materializing the N^2 folded M.
    else:
        raise ValueError(f"unknown mode: {mode}")

    def fwd(x, *bufs):
        delta = delta_fn(x, *bufs)
        return jnp.take(x, sel, axis=0) + jnp.take(delta, sel, axis=0)

    jitted = jax.jit(fwd)
    return lambda x: jitted(x, *buffers)


# ----------------------------------------------------------------------------
# pure-JAX f32 reference (unfused H / H^T / D^-1 / B^-1 form)
# ----------------------------------------------------------------------------
def _reference_forward(x, edge_index, original_node_ranges, params,
                       num_nodes, num_edges):
    _, _, (H, dinv, binv) = _build_operator_factors(edge_index, num_nodes, num_edges)
    w1, b1, w2, b2, w3, b3, w4, b4 = params

    def hconv(h, w, b):
        xw = h @ w
        e = binv.T * (H.T @ xw)
        return dinv * (H @ e) + b

    def lrelu(v):
        return jnp.where(v >= 0.0, v, NEG_SLOPE * v)

    h = lrelu(hconv(x, w1, b1))
    h = lrelu(hconv(h, w2, b2))
    h = lrelu(hconv(h, w3, b3))
    delta = hconv(h, w4, b4)
    baseline = jnp.concatenate([x[s:e] for s, e in original_node_ranges], axis=0)
    delta_sel = jnp.concatenate([delta[s:e] for s, e in original_node_ranges], axis=0)
    return baseline + delta_sel


def _init_params(key, hidden1=H1, hidden2=H2, hidden3=H3):
    ks = jax.random.split(key, 8)

    def lin(kw, kb, cin, cout):
        w = 0.1 * jax.random.normal(kw, (cin, cout), jnp.float32)
        b = 0.1 * jax.random.normal(kb, (1, cout), jnp.float32)
        return w, b

    w1, b1 = lin(ks[0], ks[1], 1, hidden1)
    w2, b2 = lin(ks[2], ks[3], hidden1, hidden2)
    w3, b3 = lin(ks[4], ks[5], hidden2, hidden3)
    w4, b4 = lin(ks[6], ks[7], hidden3, 1)
    return (w1, b1, w2, b2, w3, b3, w4, b4)


if __name__ == "__main__":
    key = jax.random.PRNGKey(0)
    k_x, k_p = jax.random.split(key)

    num_nodes = 64
    num_edges = 16

    # node features (N, 1)
    x = jax.random.normal(k_x, (num_nodes, 1), jnp.float32)

    # deterministic hypergraph: each node belongs to two hyperedges
    nodes = jnp.arange(num_nodes, dtype=jnp.int32)
    e0 = nodes % num_edges
    e1 = (nodes // 4) % num_edges
    edge_index = jnp.stack(
        [jnp.concatenate([nodes, nodes]), jnp.concatenate([e0, e1])], axis=0
    )  # (2, 128)

    original_node_ranges = [(0, 24), (40, 64)]
    params = _init_params(k_p)

    ref = _reference_forward(x, edge_index, original_node_ranges, params,
                             num_nodes, num_edges)

    # default path: E < N/2 -> unfolded two-matmul agg, fused single pallas_call
    fwd = make_hypergraph_resnet_forward(edge_index, num_nodes, num_edges,
                                         original_node_ranges, params)
    out = jax.block_until_ready(fwd(x))
    assert out.shape == (48, 1), out.shape
    # bf16 MXU operands with f32 accumulation -> loosen vs the f32 reference
    assert jnp.allclose(out, ref, atol=2e-2, rtol=2e-2), "unfolded mismatch"

    # folded path (forced): what a dense hypergraph (E >= N/2) would use
    fwd_f = make_hypergraph_resnet_forward(edge_index, num_nodes, num_edges,
                                           original_node_ranges, params,
                                           mode="fused_folded")
    out_f = jax.block_until_ready(fwd_f(x))
    assert jnp.allclose(out_f, ref, atol=2e-2, rtol=2e-2), "folded mismatch"

    # row-tiled per-layer path (forced): large-N / v7x dual-TensorCore configuration
    fwd_t = make_hypergraph_resnet_forward(edge_index, num_nodes, num_edges,
                                           original_node_ranges, params,
                                           mode="tiled_folded", row_tile=16)
    out_t = jax.block_until_ready(fwd_t(x))
    assert jnp.allclose(out_t, ref, atol=2e-2, rtol=2e-2), "tiled mismatch"

    print("KERNEL_OK")
</pallas_src>

<mosaic_0001>
module attributes {stable_mosaic.version = 11 : i64} {
  func.func @kernel(%arg0: memref<64x1xf32, #tpu.memory_space<vmem>>, %arg1: memref<64x16xbf16, #tpu.memory_space<vmem>>, %arg2: memref<16x64xbf16, #tpu.memory_space<vmem>>, %arg3: memref<64x128xbf16, #tpu.memory_space<vmem>>, %arg4: memref<8x128xf32, #tpu.memory_space<vmem>>, %arg5: memref<64x1xf32, #tpu.memory_space<vmem>>) attributes {dimension_semantics = [], scalar_prefetch = 0 : i64, scratch_operands = 0 : i64, tpu.core_type = #tpu.core_type<tc>} {
    %c0 = arith.constant 0 : index
    %c0_0 = arith.constant 0 : index
    %0 = vector.load %arg1[%c0, %c0_0] : memref<64x16xbf16, #tpu.memory_space<vmem>>, vector<64x16xbf16>
    %c0_1 = arith.constant 0 : index
    %c0_2 = arith.constant 0 : index
    %1 = vector.load %arg2[%c0_1, %c0_2] : memref<16x64xbf16, #tpu.memory_space<vmem>>, vector<16x64xbf16>
    %c0_3 = arith.constant 0 : index
    %c0_4 = arith.constant 0 : index
    %2 = vector.load %arg0[%c0_3, %c0_4] : memref<64x1xf32, #tpu.memory_space<vmem>>, vector<64x1xf32>
    %c0_5 = arith.constant 0 : index
    %c0_6 = arith.constant 0 : index
    %3 = vector.load %arg4[%c0_5, %c0_6] : memref<8x128xf32, #tpu.memory_space<vmem>>, vector<1x32xf32>
    %c1 = arith.constant 1 : index
    %c0_7 = arith.constant 0 : index
    %4 = vector.load %arg4[%c1, %c0_7] : memref<8x128xf32, #tpu.memory_space<vmem>>, vector<1x32xf32>
    %c2 = arith.constant 2 : index
    %c0_8 = arith.constant 0 : index
    %5 = vector.load %arg4[%c2, %c0_8] : memref<8x128xf32, #tpu.memory_space<vmem>>, vector<1x64xf32>
    %c3 = arith.constant 3 : index
    %c0_9 = arith.constant 0 : index
    %6 = vector.load %arg4[%c3, %c0_9] : memref<8x128xf32, #tpu.memory_space<vmem>>, vector<1x32xf32>
    %c4 = arith.constant 4 : index
    %c0_10 = arith.constant 0 : index
    %7 = vector.load %arg4[%c4, %c0_10] : memref<8x128xf32, #tpu.memory_space<vmem>>, vector<1x32xf32>
    %c5 = arith.constant 5 : index
    %c0_11 = arith.constant 0 : index
    %8 = vector.load %arg4[%c5, %c0_11] : memref<8x128xf32, #tpu.memory_space<vmem>>, vector<1x1xf32>
    %c0_12 = arith.constant 0 : index
    %c0_13 = arith.constant 0 : index
    %9 = vector.load %arg3[%c0_12, %c0_13] : memref<64x128xbf16, #tpu.memory_space<vmem>>, vector<32x64xbf16>
    %c0_14 = arith.constant 0 : index
    %c64 = arith.constant 64 : index
    %10 = vector.load %arg3[%c0_14, %c64] : memref<64x128xbf16, #tpu.memory_space<vmem>>, vector<64x32xbf16>
    %11 = vector.broadcast %2 : vector<64x1xf32> to vector<64x32xf32>
    %12 = vector.broadcast %3 : vector<1x32xf32> to vector<64x32xf32>
    %13 = arith.mulf %11, %12 : vector<64x32xf32>
    %14 = arith.truncf %13 : vector<64x32xf32> to vector<64x32xbf16>
    %cst = arith.constant dense<0.000000e+00> : vector<16x32xf32>
    %15 = tpu.matmul %1, %14, %cst {dimension_numbers = #tpu.dot_dimension_numbers<[1], [0], [0], [1], [0, 0, 1, 1], [], []>} : vector<16x64xbf16>, vector<64x32xbf16>, vector<16x32xf32> -> vector<16x32xf32>
    %16 = arith.truncf %15 : vector<16x32xf32> to vector<16x32xbf16>
    %cst_15 = arith.constant dense<0.000000e+00> : vector<64x32xf32>
    %17 = tpu.matmul %0, %16, %cst_15 {dimension_numbers = #tpu.dot_dimension_numbers<[1], [0], [0], [1], [0, 0, 1, 1], [], []>} : vector<64x16xbf16>, vector<16x32xbf16>, vector<64x32xf32> -> vector<64x32xf32>
    %18 = vector.broadcast %4 : vector<1x32xf32> to vector<64x32xf32>
    %19 = arith.addf %17, %18 : vector<64x32xf32>
    %cst_16 = arith.constant 0.00999999977 : f32
    %20 = vector.broadcast %cst_16 : f32 to vector<64x32xf32>
    %21 = arith.mulf %20, %19 : vector<64x32xf32>
    %22 = arith.maximumf %19, %21 : vector<64x32xf32>
    %23 = arith.truncf %22 : vector<64x32xf32> to vector<64x32xbf16>
    %cst_17 = arith.constant dense<0.000000e+00> : vector<64x64xf32>
    %24 = tpu.matmul %23, %9, %cst_17 {dimension_numbers = #tpu.dot_dimension_numbers<[1], [0], [0], [1], [0, 0, 1, 1], [], []>} : vector<64x32xbf16>, vector<32x64xbf16>, vector<64x64xf32> -> vector<64x64xf32>
    %25 = arith.truncf %24 : vector<64x64xf32> to vector<64x64xbf16>
    %cst_18 = arith.constant dense<0.000000e+00> : vector<16x64xf32>
    %26 = tpu.matmul %1, %25, %cst_18 {dimension_numbers = #tpu.dot_dimension_numbers<[1], [0], [0], [1], [0, 0, 1, 1], [], []>} : vector<16x64xbf16>, vector<64x64xbf16>, vector<16x64xf32> -> vector<16x64xf32>
    %27 = arith.truncf %26 : vector<16x64xf32> to vector<16x64xbf16>
    %cst_19 = arith.constant dense<0.000000e+00> : vector<64x64xf32>
    %28 = tpu.matmul %0, %27, %cst_19 {dimension_numbers = #tpu.dot_dimension_numbers<[1], [0], [0], [1], [0, 0, 1, 1], [], []>} : vector<64x16xbf16>, vector<16x64xbf16>, vector<64x64xf32> -> vector<64x64xf32>
    %29 = vector.broadcast %5 : vector<1x64xf32> to vector<64x64xf32>
    %30 = arith.addf %28, %29 : vector<64x64xf32>
    %cst_20 = arith.constant 0.00999999977 : f32
    %31 = vector.broadcast %cst_20 : f32 to vector<64x64xf32>
    %32 = arith.mulf %31, %30 : vector<64x64xf32>
    %33 = arith.maximumf %30, %32 : vector<64x64xf32>
    %34 = arith.truncf %33 : vector<64x64xf32> to vector<64x64xbf16>
    %cst_21 = arith.constant dense<0.000000e+00> : vector<64x32xf32>
    %35 = tpu.matmul %34, %10, %cst_21 {dimension_numbers = #tpu.dot_dimension_numbers<[1], [0], [0], [1], [0, 0, 1, 1], [], []>} : vector<64x64xbf16>, vector<64x32xbf16>, vector<64x32xf32> -> vector<64x32xf32>
    %36 = arith.truncf %35 : vector<64x32xf32> to vector<64x32xbf16>
    %cst_22 = arith.constant dense<0.000000e+00> : vector<16x32xf32>
    %37 = tpu.matmul %1, %36, %cst_22 {dimension_numbers = #tpu.dot_dimension_numbers<[1], [0], [0], [1], [0, 0, 1, 1], [], []>} : vector<16x64xbf16>, vector<64x32xbf16>, vector<16x32xf32> -> vector<16x32xf32>
    %38 = arith.truncf %37 : vector<16x32xf32> to vector<16x32xbf16>
    %cst_23 = arith.constant dense<0.000000e+00> : vector<64x32xf32>
    %39 = tpu.matmul %0, %38, %cst_23 {dimension_numbers = #tpu.dot_dimension_numbers<[1], [0], [0], [1], [0, 0, 1, 1], [], []>} : vector<64x16xbf16>, vector<16x32xbf16>, vector<64x32xf32> -> vector<64x32xf32>
    %40 = vector.broadcast %6 : vector<1x32xf32> to vector<64x32xf32>
    %41 = arith.addf %39, %40 : vector<64x32xf32>
    %cst_24 = arith.constant 0.00999999977 : f32
    %42 = vector.broadcast %cst_24 : f32 to vector<64x32xf32>
    %43 = arith.mulf %42, %41 : vector<64x32xf32>
    %44 = arith.maximumf %41, %43 : vector<64x32xf32>
    %45 = arith.truncf %44 : vector<64x32xf32> to vector<64x32xbf16>
    %cst_25 = arith.constant dense<0.000000e+00> : vector<16x32xf32>
    %46 = tpu.matmul %1, %45, %cst_25 {dimension_numbers = #tpu.dot_dimension_numbers<[1], [0], [0], [1], [0, 0, 1, 1], [], []>} : vector<16x64xbf16>, vector<64x32xbf16>, vector<16x32xf32> -> vector<16x32xf32>
    %47 = arith.truncf %46 : vector<16x32xf32> to vector<16x32xbf16>
    %cst_26 = arith.constant dense<0.000000e+00> : vector<64x32xf32>
    %48 = tpu.matmul %0, %47, %cst_26 {dimension_numbers = #tpu.dot_dimension_numbers<[1], [0], [0], [1], [0, 0, 1, 1], [], []>} : vector<64x16xbf16>, vector<16x32xbf16>, vector<64x32xf32> -> vector<64x32xf32>
    %49 = vector.broadcast %7 : vector<1x32xf32> to vector<64x32xf32>
    %50 = arith.mulf %48, %49 : vector<64x32xf32>
    %cst_27 = arith.constant dense<0.000000e+00> : vector<64xf32>
    %51 = vector.multi_reduction <add>, %50, %cst_27 [1] : vector<64x32xf32> to vector<64xf32>
    %52 = vector.shape_cast %51 : vector<64xf32> to vector<64x1xf32>
    %53 = vector.broadcast %8 : vector<1x1xf32> to vector<64x1xf32>
    %54 = arith.addf %52, %53 : vector<64x1xf32>
    %c0_28 = arith.constant 0 : index
    %c0_29 = arith.constant 0 : index
    %55 = vector.load %arg5[%c0_28, %c0_29] : memref<64x1xf32, #tpu.memory_space<vmem>>, vector<64x1xf32>
    tpu.vector_store %arg5[%c0_28, %c0_29], %54 {strides = array<i32>} : memref<64x1xf32, #tpu.memory_space<vmem>>, vector<64x1xf32>,
    return
  }
}

</mosaic_0001>

<llo_original>
// kernel: fwd.1
$region0: #{fwd.1}
  #allocation0 [shape = 'u32[]', space=smem, size = 0x4, offset = 0x4, fixed_abs, tag = 'smem constant byte address 0x4 - core index']
  #allocation1 [shape = 'u32[144,128]{1,0:T(1,128)}', space=vmem, size = 0x12000, scoped, tag = 'internal scratch']
  %s0 = inlined_call_operand.vmem [shape: f32[64,1], index: 0, kind: input, shape index: {}]
  %s1 = inlined_call_operand.vmem [shape: bf16[64,16], index: 1, kind: input, shape index: {}]
  %s2 = inlined_call_operand.vmem [shape: bf16[16,64], index: 2, kind: input, shape index: {}]
  %s3 = inlined_call_operand.vmem [shape: bf16[64,128], index: 3, kind: input, shape index: {}]
  %s4 = inlined_call_operand.vmem [shape: f32[8,128], index: 4, kind: input, shape index: {}]
  %s5 = inlined_call_operand.vmem [shape: f32[64,1], index: 5, kind: output, shape index: {}]
  %s6 = sld [smem:[#allocation0]]
  $region30: #{fwd.1} parent=0
    _
  %s8 = ssub.s32 1, %s6
  %s9 = scalar_select 0, %s8, %s6
  // Predicated region
  $region2: #{fwd.1} parent=0 // pred_check
    _
  $region3: #{fwd.1} parent=0 // pred_check_branch
    %11 = sbr.rel (0) target = $region5
  $region4: #{fwd.1} parent=0 // pred_region
    _
  $region5: #{fwd.1} parent=0 // pred_fallthru
    _
  // Predicated region
  $region6: #{fwd.1} parent=0 // pred_check
    _
  $region7: #{fwd.1} parent=0 // pred_check_branch
    %13 = sbr.rel (0) target = $region9
  $region8: #{fwd.1} parent=0 // pred_region
    _
  $region9: #{fwd.1} parent=0 // pred_fallthru
    _
  // Predicated region
  $region10: #{fwd.1} parent=0 // pred_check
    _
  $region11: #{fwd.1} parent=0 // pred_check_branch
    %15 = sbr.rel (0) target = $region13
  $region12: #{fwd.1} parent=0 // pred_region
    _
  $region13: #{fwd.1} parent=0 // pred_fallthru
    _
  // Predicated region
  $region14: #{fwd.1} parent=0 // pred_check
    _
  $region15: #{fwd.1} parent=0 // pred_check_branch
    %17 = sbr.rel (0) target = $region17
  $region16: #{fwd.1} parent=0 // pred_region
    _
  $region17: #{fwd.1} parent=0 // pred_fallthru
    _
  // Predicated region
  $region18: #{fwd.1} parent=0 // pred_check
    _
  $region19: #{fwd.1} parent=0 // pred_check_branch
    %19 = sbr.rel (0) target = $region21
  $region20: #{fwd.1} parent=0 // pred_region
    _
  $region21: #{fwd.1} parent=0 // pred_fallthru
    _
  %v21 = vld [vmem:[%s1] sm:$0xf]
  %v22 = vld [vmem:[%s1 + $0x4] sm:$0xf]
  %v23 = vld [vmem:[%s1 + $0x8] sm:$0xf]
  %v24 = vld [vmem:[%s1 + $0xc] sm:$0xf]
  %v25 = vld [vmem:[%s1 + $0x10] sm:$0xf]
  %v26 = vld [vmem:[%s1 + $0x14] sm:$0xf]
  %v27 = vld [vmem:[%s1 + $0x18] sm:$0xf]
  %v28 = vld [vmem:[%s1 + $0x1c] sm:$0xf]
  %v29 = vld [vmem:[%s2] sm:$0xf]
  %v30 = vld [vmem:[%s2 + $0x4] sm:$0xf]
  %v31 = vld [vmem:[%s0] sm:$0xff]
  %v32 = vld [vmem:[%s0 + $0x8] sm:$0xff]
  %v33 = vld [vmem:[%s0 + $0x10] sm:$0xff]
  %v34 = vld [vmem:[%s0 + $0x18] sm:$0xff]
  %v35 = vld [vmem:[%s0 + $0x20] sm:$0xff]
  %v36 = vld [vmem:[%s0 + $0x28] sm:$0xff]
  %v37 = vld [vmem:[%s0 + $0x30] sm:$0xff]
  %v38 = vld [vmem:[%s0 + $0x38] sm:$0xff]
  %v39 = vld [vmem:[%s4] sm:$0x1]
  %v40 = vld [vmem:[%s4 + $0x1] sm:$0x1]
  %v41 = vld [vmem:[%s4 + $0x2] sm:$0x1]
  %v42 = vld [vmem:[%s4 + $0x3] sm:$0x1]
  %v43 = vld [vmem:[%s4 + $0x4] sm:$0x1]
  %v44 = vld [vmem:[%s4 + $0x5] sm:$0x1]
  %v45 = vld [vmem:[%s3] sm:$0xf]
  %v46 = vld [vmem:[%s3 + $0x4] sm:$0xf]
  %v47 = vld [vmem:[%s3 + $0x8] sm:$0xf]
  %v48 = vld [vmem:[%s3 + $0xc] sm:$0xf]
  %v49 = vld [vmem:[%s3] sm:$0xf]
  %v50 = vld [vmem:[%s3 + $0x4] sm:$0xf]
  %v51 = vld [vmem:[%s3 + $0x8] sm:$0xf]
  %v52 = vld [vmem:[%s3 + $0xc] sm:$0xf]
  %v53 = vld [vmem:[%s3 + $0x10] sm:$0xf]
  %v54 = vld [vmem:[%s3 + $0x14] sm:$0xf]
  %v55 = vld [vmem:[%s3 + $0x18] sm:$0xf]
  %v56 = vld [vmem:[%s3 + $0x1c] sm:$0xf]
  %58 = vset.pattern.permute.xlu0 0
  %59 = vperm.xlu0 %58, %v31
  %v60 = vpop.permute.xlu0 %59
  %63 = vset.pattern.permute.xlu0 0
  %64 = vperm.xlu0 %63, %v32
  %v65 = vpop.permute.xlu0 %64
  %68 = vset.pattern.permute.xlu0 0
  %69 = vperm.xlu0 %68, %v33
  %v70 = vpop.permute.xlu0 %69
  %73 = vset.pattern.permute.xlu0 0
  %74 = vperm.xlu0 %73, %v34
  %v75 = vpop.permute.xlu0 %74
  %78 = vset.pattern.permute.xlu0 0
  %79 = vperm.xlu0 %78, %v35
  %v80 = vpop.permute.xlu0 %79
  %83 = vset.pattern.permute.xlu0 0
  %84 = vperm.xlu0 %83, %v36
  %v85 = vpop.permute.xlu0 %84
  %88 = vset.pattern.permute.xlu0 0
  %89 = vperm.xlu0 %88, %v37
  %v90 = vpop.permute.xlu0 %89
  %93 = vset.pattern.permute.xlu0 0
  %94 = vperm.xlu0 %93, %v38
  %v95 = vpop.permute.xlu0 %94
  %v97 = vlaneseq
  %v98 = vshrl.u32 %v97, 7
  %v99 = vsub.s32 0, %v98
  %v100 = vrot.slane %v39, %v99
  %v101 = vmul.f32 %v60, %v100
  %v102 = vmul.f32 %v65, %v100
  %v103 = vmul.f32 %v70, %v100
  %v104 = vmul.f32 %v75, %v100
  %v105 = vmul.f32 %v80, %v100
  %v106 = vmul.f32 %v85, %v100
  %v107 = vmul.f32 %v90, %v100
  %v108 = vmul.f32 %v95, %v100
  %v109 = vpack.c.bf16 %v102, %v101
  %v110 = vpack.c.bf16 %v104, %v103
  %v111 = vpack.c.bf16 %v106, %v105
  %v112 = vpack.c.bf16 %v108, %v107
  %v115 = vunpack.c.l.b16 %v29
  %v116 = vunpack.c.l.b16 %v30
  %v117 = vpack.c.b16 %v116, %v115
  %vm118 = vcmask 523264
  %v120 = vsel %vm118, %v117, 0
  %122 = vmatprep.subr.bf16.mxu0 0
  %123 = vmatpush1.bf16.msra.mxu0 %v109
  %124 = vmatprep.subr.bf16.mxu0 0
  %125 = vmatpush1.bf16.msra.mxu0 %v110
  %126 = vmatprep.subr.bf16.mxu0 0
  %127 = vmatpush1.bf16.msra.mxu0 %v111
  %128 = vmatprep.subr.bf16.mxu0 0
  %129 = vmatpush1.bf16.msra.mxu0 %v112
  %130 = vmatprep.subr.bf16.mxu0 0
  %131 = vmatpush1.bf16.msra.mxu0 0
  %132 = vmatprep.subr.bf16.mxu0 0
  %133 = vmatpush1.bf16.msra.mxu0 0
  %134 = vmatprep.subr.bf16.mxu0 0
  %135 = vmatpush1.bf16.msra.mxu0 0
  %136 = vmatprep.subr.bf16.mxu0 0
  %137 = vmatpush1.bf16.msra.mxu0 0
  %138 = vmatprep.subr.bf16.mxu0 0
  %139 = vmatpush1.bf16.msra.mxu0 0
  %140 = vmatprep.subr.bf16.mxu0 0
  %141 = vmatpush1.bf16.msra.mxu0 0
  %142 = vmatprep.subr.bf16.mxu0 0
  %143 = vmatpush1.bf16.msra.mxu0 0
  %144 = vmatprep.subr.bf16.mxu0 0
  %145 = vmatpush1.bf16.msra.mxu0 0
  %146 = vmatprep.subr.bf16.mxu0 0
  %147 = vmatpush1.bf16.msra.mxu0 0
  %148 = vmatprep.subr.bf16.mxu0 0
  %149 = vmatpush1.bf16.msra.mxu0 0
  %150 = vmatprep.subr.bf16.mxu0 0
  %151 = vmatpush1.bf16.msra.mxu0 0
  %152 = vmatprep.subr.bf16.mxu0 0
  %153 = vmatpush1.bf16.msra.mxu0 0
  %154 = vmatprep.mubr.bf16.mxu0 0
  %155 = vmatmul.mubr.bf16.gmra.mrb[0].mxu0 %v120
  %v156 = vpop.f32.mrb[0].mxu0
  %v157 = vadd.f32 0.0, %v156
  %v158 = vpop.f32.mrb[0].mxu0
  %v159 = vpop.f32.mrb[0].mxu0
  %v160 = vadd.f32 0.0, %v159
  %v161 = vpop.f32.mrb[0].mxu0
  %162 = vdwg.mxu0
  %v163 = vpack.c.bf16 %v160, %v157
  %v164 = vlaneseq
  %v165 = vshrl.u32 %v164, 7
  %v166 = vsub.s32 0, %v165
  %v167 = vrot.slane %v40, %v166
  %v176 = vunpack.c.l.b16 %v21
  %v177 = vunpack.c.l.b16 %v22
  %v178 = vunpack.c.l.b16 %v23
  %v179 = vunpack.c.l.b16 %v24
  %v180 = vunpack.c.l.b16 %v25
  %v181 = vunpack.c.l.b16 %v26
  %v182 = vunpack.c.l.b16 %v27
  %v183 = vunpack.c.l.b16 %v28
  %v184 = vpack.c.b16 %v177, %v176
  %v185 = vpack.c.b16 %v179, %v178
  %v186 = vpack.c.b16 %v181, %v180
  %v187 = vpack.c.b16 %v183, %v182
  %vm188 = vcmask 130048
  %v190 = vsel %vm188, %v184, 0
  %v193 = vsel %vm188, %v185, 0
  %v196 = vsel %vm188, %v186, 0
  %v199 = vsel %vm188, %v187, 0
  %201 = vmatprep.subr.bf16.mxu0 0
  %202 = vmatpush1.bf16.msra.mxu0 %v163
  %203 = vmatprep.subr.bf16.mxu0 0
  %204 = vmatpush1.bf16.msra.mxu0 0
  %205 = vmatprep.subr.bf16.mxu0 0
  %206 = vmatpush1.bf16.msra.mxu0 0
  %207 = vmatprep.subr.bf16.mxu0 0
  %208 = vmatpush1.bf16.msra.mxu0 0
  %209 = vmatprep.subr.bf16.mxu0 0
  %210 = vmatpush1.bf16.msra.mxu0 0
  %211 = vmatprep.subr.bf16.mxu0 0
  %212 = vmatpush1.bf16.msra.mxu0 0
  %213 = vmatprep.subr.bf16.mxu0 0
  %214 = vmatpush1.bf16.msra.mxu0 0
  %215 = vmatprep.subr.bf16.mxu0 0
  %216 = vmatpush1.bf16.msra.mxu0 0
  %217 = vmatprep.subr.bf16.mxu0 0
  %218 = vmatpush1.bf16.msra.mxu0 0
  %219 = vmatprep.subr.bf16.mxu0 0
  %220 = vmatpush1.bf16.msra.mxu0 0
  %221 = vmatprep.subr.bf16.mxu0 0
  %222 = vmatpush1.bf16.msra.mxu0 0
  %223 = vmatprep.subr.bf16.mxu0 0
  %224 = vmatpush1.bf16.msra.mxu0 0
  %225 = vmatprep.subr.bf16.mxu0 0
  %226 = vmatpush1.bf16.msra.mxu0 0
  %227 = vmatprep.subr.bf16.mxu0 0
  %228 = vmatpush1.bf16.msra.mxu0 0
  %229 = vmatprep.subr.bf16.mxu0 0
  %230 = vmatpush1.bf16.msra.mxu0 0
  %231 = vmatprep.subr.bf16.mxu0 0
  %232 = vmatpush1.bf16.msra.mxu0 0
  %233 = vmatprep.mubr.bf16.mxu0 0
  %234 = vmatmul.mubr.bf16.gmra.mrb[0].mxu0 %v190
  %v235 = vpop.f32.mrb[0].mxu0
  %v236 = vadd.f32 %v167, %v235
  %v237 = vpop.f32.mrb[0].mxu0
  %v238 = vpop.f32.mrb[0].mxu0
  %v239 = vadd.f32 %v167, %v238
  %v240 = vpop.f32.mrb[0].mxu0
  %241 = vmatprep.mubr.bf16.mxu0 0
  %242 = vmatmul.mubr.bf16.gmra.mrb[0].mxu0 %v193
  %v243 = vpop.f32.mrb[0].mxu0
  %v244 = vadd.f32 %v167, %v243
  %v245 = vpop.f32.mrb[0].mxu0
  %v246 = vpop.f32.mrb[0].mxu0
  %v247 = vadd.f32 %v167, %v246
  %v248 = vpop.f32.mrb[0].mxu0
  %249 = vmatprep.mubr.bf16.mxu0 0
  %250 = vmatmul.mubr.bf16.gmra.mrb[0].mxu0 %v196
  %v251 = vpop.f32.mrb[0].mxu0
  %v252 = vadd.f32 %v167, %v251
  %v253 = vpop.f32.mrb[0].mxu0
  %v254 = vpop.f32.mrb[0].mxu0
  %v255 = vadd.f32 %v167, %v254
  %v256 = vpop.f32.mrb[0].mxu0
  %257 = vmatprep.mubr.bf16.mxu0 0
  %258 = vmatmul.mubr.bf16.gmra.mrb[0].mxu0 %v199
  %v259 = vpop.f32.mrb[0].mxu0
  %v260 = vadd.f32 %v167, %v259
  %v261 = vpop.f32.mrb[0].mxu0
  %v262 = vpop.f32.mrb[0].mxu0
  %v263 = vadd.f32 %v167, %v262
  %v264 = vpop.f32.mrb[0].mxu0
  %265 = vdwg.mxu0
  %v266 = vmul.f32 %v236, 0.01
  %v267 = vmul.f32 %v239, 0.01
  %v268 = vmul.f32 %v244, 0.01
  %v269 = vmul.f32 %v247, 0.01
  %v270 = vmul.f32 %v252, 0.01
  %v271 = vmul.f32 %v255, 0.01
  %v272 = vmul.f32 %v260, 0.01
  %v273 = vmul.f32 %v263, 0.01
  %v274 = vmax.f32 %v236, %v266
  %v275 = vmax.f32 %v239, %v267
  %v276 = vmax.f32 %v244, %v268
  %v277 = vmax.f32 %v247, %v269
  %v278 = vmax.f32 %v252, %v270
  %v279 = vmax.f32 %v255, %v271
  %v280 = vmax.f32 %v260, %v272
  %v281 = vmax.f32 %v263, %v273
  %v282 = vpack.c.bf16 %v275, %v274
  %v283 = vpack.c.bf16 %v277, %v276
  %v284 = vpack.c.bf16 %v279, %v278
  %v285 = vpack.c.bf16 %v281, %v280
  %v290 = vunpack.c.l.b16 %v45
  %v291 = vunpack.c.l.b16 %v46
  %v292 = vunpack.c.l.b16 %v47
  %v293 = vunpack.c.l.b16 %v48
  %v294 = vpack.c.b16 %v291, %v290
  %v295 = vpack.c.b16 %v293, %v292
  %vm298 = vcmask 261120
  %v300 = vsel %vm298, %v282, 0
  %v303 = vsel %vm298, %v283, 0
  %v306 = vsel %vm298, %v284, 0
  %v309 = vsel %vm298, %v285, 0
  %311 = vmatprep.subr.bf16.mxu0 0
  %312 = vmatpush1.bf16.msra.mxu0 %v294
  %313 = vmatprep.subr.bf16.mxu0 0
  %314 = vmatpush1.bf16.msra.mxu0 %v295
  %315 = vmatprep.subr.bf16.mxu0 0
  %316 = vmatpush1.bf16.msra.mxu0 0
  %317 = vmatprep.subr.bf16.mxu0 0
  %318 = vmatpush1.bf16.msra.mxu0 0
  %319 = vmatprep.subr.bf16.mxu0 0
  %320 = vmatpush1.bf16.msra.mxu0 0
  %321 = vmatprep.subr.bf16.mxu0 0
  %322 = vmatpush1.bf16.msra.mxu0 0
  %323 = vmatprep.subr.bf16.mxu0 0
  %324 = vmatpush1.bf16.msra.mxu0 0
  %325 = vmatprep.subr.bf16.mxu0 0
  %326 = vmatpush1.bf16.msra.mxu0 0
  %327 = vmatprep.subr.bf16.mxu0 0
  %328 = vmatpush1.bf16.msra.mxu0 0
  %329 = vmatprep.subr.bf16.mxu0 0
  %330 = vmatpush1.bf16.msra.mxu0 0
  %331 = vmatprep.subr.bf16.mxu0 0
  %332 = vmatpush1.bf16.msra.mxu0 0
  %333 = vmatprep.subr.bf16.mxu0 0
  %334 = vmatpush1.bf16.msra.mxu0 0
  %335 = vmatprep.subr.bf16.mxu0 0
  %336 = vmatpush1.bf16.msra.mxu0 0
  %337 = vmatprep.subr.bf16.mxu0 0
  %338 = vmatpush1.bf16.msra.mxu0 0
  %339 = vmatprep.subr.bf16.mxu0 0
  %340 = vmatpush1.bf16.msra.mxu0 0
  %341 = vmatprep.subr.bf16.mxu0 0
  %342 = vmatpush1.bf16.msra.mxu0 0
  %343 = vmatprep.mubr.bf16.mxu0 0
  %344 = vmatmul.mubr.bf16.gmra.mrb[0].mxu0 %v300
  %v345 = vpop.f32.mrb[0].mxu0
  %v346 = vadd.f32 0.0, %v345
  %v347 = vpop.f32.mrb[0].mxu0
  %v348 = vpop.f32.mrb[0].mxu0
  %v349 = vadd.f32 0.0, %v348
  %v350 = vpop.f32.mrb[0].mxu0
  %351 = vmatprep.mubr.bf16.mxu0 0
  %352 = vmatmul.mubr.bf16.gmra.mrb[0].mxu0 %v303
  %v353 = vpop.f32.mrb[0].mxu0
  %v354 = vadd.f32 0.0, %v353
  %v355 = vpop.f32.mrb[0].mxu0
  %v356 = vpop.f32.mrb[0].mxu0
  %v357 = vadd.f32 0.0, %v356
  %v358 = vpop.f32.mrb[0].mxu0
  %359 = vmatprep.mubr.bf16.mxu0 0
  %360 = vmatmul.mubr.bf16.gmra.mrb[0].mxu0 %v306
  %v361 = vpop.f32.mrb[0].mxu0
  %v362 = vadd.f32 0.0, %v361
  %v363 = vpop.f32.mrb[0].mxu0
  %v364 = vpop.f32.mrb[0].mxu0
  %v365 = vadd.f32 0.0, %v364
  %v366 = vpop.f32.mrb[0].mxu0
  %367 = vmatprep.mubr.bf16.mxu0 0
  %368 = vmatmul.mubr.bf16.gmra.mrb[0].mxu0 %v309
  %v369 = vpop.f32.mrb[0].mxu0
  %v370 = vadd.f32 0.0, %v369
  %v371 = vpop.f32.mrb[0].mxu0
  %v372 = vpop.f32.mrb[0].mxu0
  %v373 = vadd.f32 0.0, %v372
  %v374 = vpop.f32.mrb[0].mxu0
  %375 = vdwg.mxu0
  %v376 = vpack.c.bf16 %v349, %v346
  %v377 = vpack.c.bf16 %v357, %v354
  %v378 = vpack.c.bf16 %v365, %v362
  %v379 = vpack.c.bf16 %v373, %v370
  %380 = vmatprep.subr.bf16.mxu0 0
  %381 = vmatpush1.bf16.msra.mxu0 %v376
  %382 = vmatprep.subr.bf16.mxu0 0
  %383 = vmatpush1.bf16.msra.mxu0 %v377
  %384 = vmatprep.subr.bf16.mxu0 0
  %385 = vmatpush1.bf16.msra.mxu0 %v378
  %386 = vmatprep.subr.bf16.mxu0 0
  %387 = vmatpush1.bf16.msra.mxu0 %v379
  %388 = vmatprep.subr.bf16.mxu0 0
  %389 = vmatpush1.bf16.msra.mxu0 0
  %390 = vmatprep.subr.bf16.mxu0 0
  %391 = vmatpush1.bf16.msra.mxu0 0
  %392 = vmatprep.subr.bf16.mxu0 0
  %393 = vmatpush1.bf16.msra.mxu0 0
  %394 = vmatprep.subr.bf16.mxu0 0
  %395 = vmatpush1.bf16.msra.mxu0 0
  %396 = vmatprep.subr.bf16.mxu0 0
  %397 = vmatpush1.bf16.msra.mxu0 0
  %398 = vmatprep.subr.bf16.mxu0 0
  %399 = vmatpush1.bf16.msra.mxu0 0
  %400 = vmatprep.subr.bf16.mxu0 0
  %401 = vmatpush1.bf16.msra.mxu0 0
  %402 = vmatprep.subr.bf16.mxu0 0
  %403 = vmatpush1.bf16.msra.mxu0 0
  %404 = vmatprep.subr.bf16.mxu0 0
  %405 = vmatpush1.bf16.msra.mxu0 0
  %406 = vmatprep.subr.bf16.mxu0 0
  %407 = vmatpush1.bf16.msra.mxu0 0
  %408 = vmatprep.subr.bf16.mxu0 0
  %409 = vmatpush1.bf16.msra.mxu0 0
  %410 = vmatprep.subr.bf16.mxu0 0
  %411 = vmatpush1.bf16.msra.mxu0 0
  %412 = vmatprep.mubr.bf16.mxu0 0
  %413 = vmatmul.mubr.bf16.gmra.mrb[0].mxu0 %v120
  %v414 = vpop.f32.mrb[0].mxu0
  %v415 = vadd.f32 0.0, %v414
  %v416 = vpop.f32.mrb[0].mxu0
  %v417 = vpop.f32.mrb[0].mxu0
  %v418 = vadd.f32 0.0, %v417
  %v419 = vpop.f32.mrb[0].mxu0
  %420 = vdwg.mxu0
  %v421 = vpack.c.bf16 %v418, %v415
  %v422 = vlaneseq
  %v423 = vshrl.u32 %v422, 7
  %v424 = vsub.s32 0, %v423
  %v425 = vrot.slane %v41, %v424
  %426 = vmatprep.subr.bf16.mxu0 0
  %427 = vmatpush1.bf16.msra.mxu0 %v421
  %428 = vmatprep.subr.bf16.mxu0 0
  %429 = vmatpush1.bf16.msra.mxu0 0
  %430 = vmatprep.subr.bf16.mxu0 0
  %431 = vmatpush1.bf16.msra.mxu0 0
  %432 = vmatprep.subr.bf16.mxu0 0
  %433 = vmatpush1.bf16.msra.mxu0 0
  %434 = vmatprep.subr.bf16.mxu0 0
  %435 = vmatpush1.bf16.msra.mxu0 0
  %436 = vmatprep.subr.bf16.mxu0 0
  %437 = vmatpush1.bf16.msra.mxu0 0
  %438 = vmatprep.subr.bf16.mxu0 0
  %439 = vmatpush1.bf16.msra.mxu0 0
  %440 = vmatprep.subr.bf16.mxu0 0
  %441 = vmatpush1.bf16.msra.mxu0 0
  %442 = vmatprep.subr.bf16.mxu0 0
  %443 = vmatpush1.bf16.msra.mxu0 0
  %444 = vmatprep.subr.bf16.mxu0 0
  %445 = vmatpush1.bf16.msra.mxu0 0
  %446 = vmatprep.subr.bf16.mxu0 0
  %447 = vmatpush1.bf16.msra.mxu0 0
  %448 = vmatprep.subr.bf16.mxu0 0
  %449 = vmatpush1.bf16.msra.mxu0 0
  %450 = vmatprep.subr.bf16.mxu0 0
  %451 = vmatpush1.bf16.msra.mxu0 0
  %452 = vmatprep.subr.bf16.mxu0 0
  %453 = vmatpush1.bf16.msra.mxu0 0
  %454 = vmatprep.subr.bf16.mxu0 0
  %455 = vmatpush1.bf16.msra.mxu0 0
  %456 = vmatprep.subr.bf16.mxu0 0
  %457 = vmatpush1.bf16.msra.mxu0 0
  %458 = vmatprep.mubr.bf16.mxu0 0
  %459 = vmatmul.mubr.bf16.gmra.mrb[0].mxu0 %v190
  %v460 = vpop.f32.mrb[0].mxu0
  %v461 = vadd.f32 %v425, %v460
  %v462 = vpop.f32.mrb[0].mxu0
  %v463 = vpop.f32.mrb[0].mxu0
  %v464 = vadd.f32 %v425, %v463
  %v465 = vpop.f32.mrb[0].mxu0
  %466 = vmatprep.mubr.bf16.mxu0 0
  %467 = vmatmul.mubr.bf16.gmra.mrb[0].mxu0 %v193
  %v468 = vpop.f32.mrb[0].mxu0
  %v469 = vadd.f32 %v425, %v468
  %v470 = vpop.f32.mrb[0].mxu0
  %v471 = vpop.f32.mrb[0].mxu0
  %v472 = vadd.f32 %v425, %v471
  %v473 = vpop.f32.mrb[0].mxu0
  %474 = vmatprep.mubr.bf16.mxu0 0
  %475 = vmatmul.mubr.bf16.gmra.mrb[0].mxu0 %v196
  %v476 = vpop.f32.mrb[0].mxu0
  %v477 = vadd.f32 %v425, %v476
  %v478 = vpop.f32.mrb[0].mxu0
  %v479 = vpop.f32.mrb[0].mxu0
  %v480 = vadd.f32 %v425, %v479
  %v481 = vpop.f32.mrb[0].mxu0
  %482 = vmatprep.mubr.bf16.mxu0 0
  %483 = vmatmul.mubr.bf16.gmra.mrb[0].mxu0 %v199
  %v484 = vpop.f32.mrb[0].mxu0
  %v485 = vadd.f32 %v425, %v484
  %v486 = vpop.f32.mrb[0].mxu0
  %v487 = vpop.f32.mrb[0].mxu0
  %v488 = vadd.f32 %v425, %v487
  %v489 = vpop.f32.mrb[0].mxu0
  %490 = vdwg.mxu0
  %v491 = vmul.f32 %v461, 0.01
  %v492 = vmul.f32 %v464, 0.01
  %v493 = vmul.f32 %v469, 0.01
  %v494 = vmul.f32 %v472, 0.01
  %v495 = vmul.f32 %v477, 0.01
  %v496 = vmul.f32 %v480, 0.01
  %v497 = vmul.f32 %v485, 0.01
  %v498 = vmul.f32 %v488, 0.01
  %v499 = vmax.f32 %v461, %v491
  %v500 = vmax.f32 %v464, %v492
  %v501 = vmax.f32 %v469, %v493
  %v502 = vmax.f32 %v472, %v494
  %v503 = vmax.f32 %v477, %v495
  %v504 = vmax.f32 %v480, %v496
  %v505 = vmax.f32 %v485, %v497
  %v506 = vmax.f32 %v488, %v498
  %v507 = vpack.c.bf16 %v500, %v499
  %v508 = vpack.c.bf16 %v502, %v501
  %v509 = vpack.c.bf16 %v504, %v503
  %v510 = vpack.c.bf16 %v506, %v505
  %v519 = vunpack.c.l.b16 %v49
  %v520 = vunpack.c.l.b16 %v50
  %v521 = vunpack.c.l.b16 %v51
  %v522 = vunpack.c.l.b16 %v52
  %v523 = vunpack.c.l.b16 %v53
  %v524 = vunpack.c.l.b16 %v54
  %v525 = vunpack.c.l.b16 %v55
  %v526 = vunpack.c.l.b16 %v56
  %v527 = vpack.c.b16 %v520, %v519
  %v528 = vpack.c.b16 %v522, %v521
  %v529 = vpack.c.b16 %v524, %v523
  %v530 = vpack.c.b16 %v526, %v525
  %531 = vrot.lane.b32.xlu0 %v527, 64
  %v532 = vpop.permute.xlu0 %531
  %533 = vrot.lane.b32.xlu0 %v528, 64
  %v534 = vpop.permute.xlu0 %533
  %535 = vrot.lane.b32.xlu0 %v529, 64
  %v536 = vpop.permute.xlu0 %535
  %537 = vrot.lane.b32.xlu0 %v530, 64
  %v538 = vpop.permute.xlu0 %537
  %v544 = vsel %vm118, %v507, 0
  %v547 = vsel %vm118, %v508, 0
  %v550 = vsel %vm118, %v509, 0
  %v553 = vsel %vm118, %v510, 0
  %555 = vmatprep.subr.bf16.mxu0 0
  %556 = vmatpush1.bf16.msra.mxu0 %v532
  %557 = vmatprep.subr.bf16.mxu0 0
  %558 = vmatpush1.bf16.msra.mxu0 %v534
  %559 = vmatprep.subr.bf16.mxu0 0
  %560 = vmatpush1.bf16.msra.mxu0 %v536
  %561 = vmatprep.subr.bf16.mxu0 0
  %562 = vmatpush1.bf16.msra.mxu0 %v538
  %563 = vmatprep.subr.bf16.mxu0 0
  %564 = vmatpush1.bf16.msra.mxu0 0
  %565 = vmatprep.subr.bf16.mxu0 0
  %566 = vmatpush1.bf16.msra.mxu0 0
  %567 = vmatprep.subr.bf16.mxu0 0
  %568 = vmatpush1.bf16.msra.mxu0 0
  %569 = vmatprep.subr.bf16.mxu0 0
  %570 = vmatpush1.bf16.msra.mxu0 0
  %571 = vmatprep.subr.bf16.mxu0 0
  %572 = vmatpush1.bf16.msra.mxu0 0
  %573 = vmatprep.subr.bf16.mxu0 0
  %574 = vmatpush1.bf16.msra.mxu0 0
  %575 = vmatprep.subr.bf16.mxu0 0
  %576 = vmatpush1.bf16.msra.mxu0 0
  %577 = vmatprep.subr.bf16.mxu0 0
  %578 = vmatpush1.bf16.msra.mxu0 0
  %579 = vmatprep.subr.bf16.mxu0 0
  %580 = vmatpush1.bf16.msra.mxu0 0
  %581 = vmatprep.subr.bf16.mxu0 0
  %582 = vmatpush1.bf16.msra.mxu0 0
  %583 = vmatprep.subr.bf16.mxu0 0
  %584 = vmatpush1.bf16.msra.mxu0 0
  %585 = vmatprep.subr.bf16.mxu0 0
  %586 = vmatpush1.bf16.msra.mxu0 0
  %587 = vmatprep.mubr.bf16.mxu0 0
  %588 = vmatmul.mubr.bf16.gmra.mrb[0].mxu0 %v544
  %v589 = vpop.f32.mrb[0].mxu0
  %v590 = vadd.f32 0.0, %v589
  %v591 = vpop.f32.mrb[0].mxu0
  %v592 = vpop.f32.mrb[0].mxu0
  %v593 = vadd.f32 0.0, %v592
  %v594 = vpop.f32.mrb[0].mxu0
  %595 = vmatprep.mubr.bf16.mxu0 0
  %596 = vmatmul.mubr.bf16.gmra.mrb[0].mxu0 %v547
  %v597 = vpop.f32.mrb[0].mxu0
  %v598 = vadd.f32 0.0, %v597
  %v599 = vpop.f32.mrb[0].mxu0
  %v600 = vpop.f32.mrb[0].mxu0
  %v601 = vadd.f32 0.0, %v600
  %v602 = vpop.f32.mrb[0].mxu0
  %603 = vmatprep.mubr.bf16.mxu0 0
  %604 = vmatmul.mubr.bf16.gmra.mrb[0].mxu0 %v550
  %v605 = vpop.f32.mrb[0].mxu0
  %v606 = vadd.f32 0.0, %v605
  %v607 = vpop.f32.mrb[0].mxu0
  %v608 = vpop.f32.mrb[0].mxu0
  %v609 = vadd.f32 0.0, %v608
  %v610 = vpop.f32.mrb[0].mxu0
  %611 = vmatprep.mubr.bf16.mxu0 0
  %612 = vmatmul.mubr.bf16.gmra.mrb[0].mxu0 %v553
  %v613 = vpop.f32.mrb[0].mxu0
  %v614 = vadd.f32 0.0, %v613
  %v615 = vpop.f32.mrb[0].mxu0
  %v616 = vpop.f32.mrb[0].mxu0
  %v617 = vadd.f32 0.0, %v616
  %v618 = vpop.f32.mrb[0].mxu0
  %619 = vdwg.mxu0
  %v620 = vpack.c.bf16 %v593, %v590
  %v621 = vpack.c.bf16 %v601, %v598
  %v622 = vpack.c.bf16 %v609, %v606
  %v623 = vpack.c.bf16 %v617, %v614
  %624 = vmatprep.subr.bf16.mxu0 0
  %625 = vmatpush1.bf16.msra.mxu0 %v620
  %626 = vmatprep.subr.bf16.mxu0 0
  %627 = vmatpush1.bf16.msra.mxu0 %v621
  %628 = vmatprep.subr.bf16.mxu0 0
  %629 = vmatpush1.bf16.msra.mxu0 %v622
  %630 = vmatprep.subr.bf16.mxu0 0
  %631 = vmatpush1.bf16.msra.mxu0 %v623
  %632 = vmatprep.subr.bf16.mxu0 0
  %633 = vmatpush1.bf16.msra.mxu0 0
  %634 = vmatprep.subr.bf16.mxu0 0
  %635 = vmatpush1.bf16.msra.mxu0 0
  %636 = vmatprep.subr.bf16.mxu0 0
  %637 = vmatpush1.bf16.msra.mxu0 0
  %638 = vmatprep.subr.bf16.mxu0 0
  %639 = vmatpush1.bf16.msra.mxu0 0
  %640 = vmatprep.subr.bf16.mxu0 0
  %641 = vmatpush1.bf16.msra.mxu0 0
  %642 = vmatprep.subr.bf16.mxu0 0
  %643 = vmatpush1.bf16.msra.mxu0 0
  %644 = vmatprep.subr.bf16.mxu0 0
  %645 = vmatpush1.bf16.msra.mxu0 0
  %646 = vmatprep.subr.bf16.mxu0 0
  %647 = vmatpush1.bf16.msra.mxu0 0
  %648 = vmatprep.subr.bf16.mxu0 0
  %649 = vmatpush1.bf16.msra.mxu0 0
  %650 = vmatprep.subr.bf16.mxu0 0
  %651 = vmatpush1.bf16.msra.mxu0 0
  %652 = vmatprep.subr.bf16.mxu0 0
  %653 = vmatpush1.bf16.msra.mxu0 0
  %654 = vmatprep.subr.bf16.mxu0 0
  %655 = vmatpush1.bf16.msra.mxu0 0
  %656 = vmatprep.mubr.bf16.mxu0 0
  %657 = vmatmul.mubr.bf16.gmra.mrb[0].mxu0 %v120
  %v658 = vpop.f32.mrb[0].mxu0
  %v659 = vadd.f32 0.0, %v658
  %v660 = vpop.f32.mrb[0].mxu0
  %v661 = vpop.f32.mrb[0].mxu0
  %v662 = vadd.f32 0.0, %v661
  %v663 = vpop.f32.mrb[0].mxu0
  %664 = vdwg.mxu0
  %v665 = vpack.c.bf16 %v662, %v659
  %v666 = vlaneseq
  %v667 = vshrl.u32 %v666, 7
  %v668 = vsub.s32 0, %v667
  %v669 = vrot.slane %v42, %v668
  %670 = vmatprep.subr.bf16.mxu0 0
  %671 = vmatpush1.bf16.msra.mxu0 %v665
  %672 = vmatprep.subr.bf16.mxu0 0
  %673 = vmatpush1.bf16.msra.mxu0 0
  %674 = vmatprep.subr.bf16.mxu0 0
  %675 = vmatpush1.bf16.msra.mxu0 0
  %676 = vmatprep.subr.bf16.mxu0 0
  %677 = vmatpush1.bf16.msra.mxu0 0
  %678 = vmatprep.subr.bf16.mxu0 0
  %679 = vmatpush1.bf16.msra.mxu0 0
  %680 = vmatprep.subr.bf16.mxu0 0
  %681 = vmatpush1.bf16.msra.mxu0 0
  %682 = vmatprep.subr.bf16.mxu0 0
  %683 = vmatpush1.bf16.msra.mxu0 0
  %684 = vmatprep.subr.bf16.mxu0 0
  %685 = vmatpush1.bf16.msra.mxu0 0
  %686 = vmatprep.subr.bf16.mxu0 0
  %687 = vmatpush1.bf16.msra.mxu0 0
  %688 = vmatprep.subr.bf16.mxu0 0
  %689 = vmatpush1.bf16.msra.mxu0 0
  %690 = vmatprep.subr.bf16.mxu0 0
  %691 = vmatpush1.bf16.msra.mxu0 0
  %692 = vmatprep.subr.bf16.mxu0 0
  %693 = vmatpush1.bf16.msra.mxu0 0
  %694 = vmatprep.subr.bf16.mxu0 0
  %695 = vmatpush1.bf16.msra.mxu0 0
  %696 = vmatprep.subr.bf16.mxu0 0
  %697 = vmatpush1.bf16.msra.mxu0 0
  %698 = vmatprep.subr.bf16.mxu0 0
  %699 = vmatpush1.bf16.msra.mxu0 0
  %700 = vmatprep.subr.bf16.mxu0 0
  %701 = vmatpush1.bf16.msra.mxu0 0
  %702 = vmatprep.mubr.bf16.mxu0 0
  %703 = vmatmul.mubr.bf16.gmra.mrb[0].mxu0 %v190
  %v704 = vpop.f32.mrb[0].mxu0
  %v705 = vadd.f32 %v669, %v704
  %v706 = vpop.f32.mrb[0].mxu0
  %v707 = vpop.f32.mrb[0].mxu0
  %v708 = vadd.f32 %v669, %v707
  %v709 = vpop.f32.mrb[0].mxu0
  %710 = vmatprep.mubr.bf16.mxu0 0
  %711 = vmatmul.mubr.bf16.gmra.mrb[0].mxu0 %v193
  %v712 = vpop.f32.mrb[0].mxu0
  %v713 = vadd.f32 %v669, %v712
  %v714 = vpop.f32.mrb[0].mxu0
  %v715 = vpop.f32.mrb[0].mxu0
  %v716 = vadd.f32 %v669, %v715
  %v717 = vpop.f32.mrb[0].mxu0
  %718 = vmatprep.mubr.bf16.mxu0 0
  %719 = vmatmul.mubr.bf16.gmra.mrb[0].mxu0 %v196
  %v720 = vpop.f32.mrb[0].mxu0
  %v721 = vadd.f32 %v669, %v720
  %v722 = vpop.f32.mrb[0].mxu0
  %v723 = vpop.f32.mrb[0].mxu0
  %v724 = vadd.f32 %v669, %v723
  %v725 = vpop.f32.mrb[0].mxu0
  %726 = vmatprep.mubr.bf16.mxu0 0
  %727 = vmatmul.mubr.bf16.gmra.mrb[0].mxu0 %v199
  %v728 = vpop.f32.mrb[0].mxu0
  %v729 = vadd.f32 %v669, %v728
  %v730 = vpop.f32.mrb[0].mxu0
  %v731 = vpop.f32.mrb[0].mxu0
  %v732 = vadd.f32 %v669, %v731
  %v733 = vpop.f32.mrb[0].mxu0
  %734 = vdwg.mxu0
  %v735 = vmul.f32 %v705, 0.01
  %v736 = vmul.f32 %v708, 0.01
  %v737 = vmul.f32 %v713, 0.01
  %v738 = vmul.f32 %v716, 0.01
  %v739 = vmul.f32 %v721, 0.01
  %v740 = vmul.f32 %v724, 0.01
  %v741 = vmul.f32 %v729, 0.01
  %v742 = vmul.f32 %v732, 0.01
  %v743 = vmax.f32 %v705, %v735
  %v744 = vmax.f32 %v708, %v736
  %v745 = vmax.f32 %v713, %v737
  %v746 = vmax.f32 %v716, %v738
  %v747 = vmax.f32 %v721, %v739
  %v748 = vmax.f32 %v724, %v740
  %v749 = vmax.f32 %v729, %v741
  %v750 = vmax.f32 %v732, %v742
  %v751 = vpack.c.bf16 %v744, %v743
  %v752 = vpack.c.bf16 %v746, %v745
  %v753 = vpack.c.bf16 %v748, %v747
  %v754 = vpack.c.bf16 %v750, %v749
  %755 = vmatprep.subr.bf16.mxu0 0
  %756 = vmatpush1.bf16.msra.mxu0 %v751
  %757 = vmatprep.subr.bf16.mxu0 0
  %758 = vmatpush1.bf16.msra.mxu0 %v752
  %759 = vmatprep.subr.bf16.mxu0 0
  %760 = vmatpush1.bf16.msra.mxu0 %v753
  %761 = vmatprep.subr.bf16.mxu0 0
  %762 = vmatpush1.bf16.msra.mxu0 %v754
  %763 = vmatprep.subr.bf16.mxu0 0
  %764 = vmatpush1.bf16.msra.mxu0 0
  %765 = vmatprep.subr.bf16.mxu0 0
  %766 = vmatpush1.bf16.msra.mxu0 0
  %767 = vmatprep.subr.bf16.mxu0 0
  %768 = vmatpush1.bf16.msra.mxu0 0
  %769 = vmatprep.subr.bf16.mxu0 0
  %770 = vmatpush1.bf16.msra.mxu0 0
  %771 = vmatprep.subr.bf16.mxu0 0
  %772 = vmatpush1.bf16.msra.mxu0 0
  %773 = vmatprep.subr.bf16.mxu0 0
  %774 = vmatpush1.bf16.msra.mxu0 0
  %775 = vmatprep.subr.bf16.mxu0 0
  %776 = vmatpush1.bf16.msra.mxu0 0
  %777 = vmatprep.subr.bf16.mxu0 0
  %778 = vmatpush1.bf16.msra.mxu0 0
  %779 = vmatprep.subr.bf16.mxu0 0
  %780 = vmatpush1.bf16.msra.mxu0 0
  %781 = vmatprep.subr.bf16.mxu0 0
  %782 = vmatpush1.bf16.msra.mxu0 0
  %783 = vmatprep.subr.bf16.mxu0 0
  %784 = vmatpush1.bf16.msra.mxu0 0
  %785 = vmatprep.subr.bf16.mxu0 0
  %786 = vmatpush1.bf16.msra.mxu0 0
  %787 = vmatprep.mubr.bf16.mxu0 0
  %788 = vmatmul.mubr.bf16.gmra.mrb[0].mxu0 %v120
  %v789 = vpop.f32.mrb[0].mxu0
  %v790 = vadd.f32 0.0, %v789
  %v791 = vpop.f32.mrb[0].mxu0
  %v792 = vpop.f32.mrb[0].mxu0
  %v793 = vadd.f32 0.0, %v792
  %v794 = vpop.f32.mrb[0].mxu0
  %795 = vdwg.mxu0
  %v796 = vpack.c.bf16 %v793, %v790
  %797 = vmatprep.subr.bf16.mxu0 0
  %798 = vmatpush1.bf16.msra.mxu0 %v796
  %799 = vmatprep.subr.bf16.mxu0 0
  %800 = vmatpush1.bf16.msra.mxu0 0
  %801 = vmatprep.subr.bf16.mxu0 0
  %802 = vmatpush1.bf16.msra.mxu0 0
  %803 = vmatprep.subr.bf16.mxu0 0
  %804 = vmatpush1.bf16.msra.mxu0 0
  %805 = vmatprep.subr.bf16.mxu0 0
  %806 = vmatpush1.bf16.msra.mxu0 0
  %807 = vmatprep.subr.bf16.mxu0 0
  %808 = vmatpush1.bf16.msra.mxu0 0
  %809 = vmatprep.subr.bf16.mxu0 0
  %810 = vmatpush1.bf16.msra.mxu0 0
  %811 = vmatprep.subr.bf16.mxu0 0
  %812 = vmatpush1.bf16.msra.mxu0 0
  %813 = vmatprep.subr.bf16.mxu0 0
  %814 = vmatpush1.bf16.msra.mxu0 0
  %815 = vmatprep.subr.bf16.mxu0 0
  %816 = vmatpush1.bf16.msra.mxu0 0
  %817 = vmatprep.subr.bf16.mxu0 0
  %818 = vmatpush1.bf16.msra.mxu0 0
  %819 = vmatprep.subr.bf16.mxu0 0
  %820 = vmatpush1.bf16.msra.mxu0 0
  %821 = vmatprep.subr.bf16.mxu0 0
  %822 = vmatpush1.bf16.msra.mxu0 0
  %823 = vmatprep.subr.bf16.mxu0 0
  %824 = vmatpush1.bf16.msra.mxu0 0
  %825 = vmatprep.subr.bf16.mxu0 0
  %826 = vmatpush1.bf16.msra.mxu0 0
  %827 = vmatprep.subr.bf16.mxu0 0
  %828 = vmatpush1.bf16.msra.mxu0 0
  %829 = vmatprep.mubr.bf16.mxu0 0
  %830 = vmatmul.mubr.bf16.gmra.mrb[0].mxu0 %v190
  %v831 = vpop.f32.mrb[0].mxu0
  %v832 = vadd.f32 0.0, %v831
  %v833 = vpop.f32.mrb[0].mxu0
  %v834 = vpop.f32.mrb[0].mxu0
  %v835 = vadd.f32 0.0, %v834
  %v836 = vpop.f32.mrb[0].mxu0
  %837 = vmatprep.mubr.bf16.mxu0 0
  %838 = vmatmul.mubr.bf16.gmra.mrb[0].mxu0 %v193
  %v839 = vpop.f32.mrb[0].mxu0
  %v840 = vadd.f32 0.0, %v839
  %v841 = vpop.f32.mrb[0].mxu0
  %v842 = vpop.f32.mrb[0].mxu0
  %v843 = vadd.f32 0.0, %v842
  %v844 = vpop.f32.mrb[0].mxu0
  %845 = vmatprep.mubr.bf16.mxu0 0
  %846 = vmatmul.mubr.bf16.gmra.mrb[0].mxu0 %v196
  %v847 = vpop.f32.mrb[0].mxu0
  %v848 = vadd.f32 0.0, %v847
  %v849 = vpop.f32.mrb[0].mxu0
  %v850 = vpop.f32.mrb[0].mxu0
  %v851 = vadd.f32 0.0, %v850
  %v852 = vpop.f32.mrb[0].mxu0
  %853 = vmatprep.mubr.bf16.mxu0 0
  %854 = vmatmul.mubr.bf16.gmra.mrb[0].mxu0 %v199
  %v855 = vpop.f32.mrb[0].mxu0
  %v856 = vadd.f32 0.0, %v855
  %v857 = vpop.f32.mrb[0].mxu0
  %v858 = vpop.f32.mrb[0].mxu0
  %v859 = vadd.f32 0.0, %v858
  %v860 = vpop.f32.mrb[0].mxu0
  %861 = vdwg.mxu0
  %v862 = vlaneseq
  %v863 = vshrl.u32 %v862, 7
  %v864 = vsub.s32 0, %v863
  %v865 = vrot.slane %v43, %v864
  %v866 = vmul.f32 %v832, %v865
  %v867 = vmul.f32 %v835, %v865
  %v868 = vmul.f32 %v840, %v865
  %v869 = vmul.f32 %v843, %v865
  %v870 = vmul.f32 %v848, %v865
  %v871 = vmul.f32 %v851, %v865
  %v872 = vmul.f32 %v856, %v865
  %v873 = vmul.f32 %v859, %v865
  %v874 = vsel %vm298, %v866, 0.0
  %875 = vadd.xlane.f32.xlu0 %v874
  %v876 = vpop.xlane.xlu0 %875
  %v877 = vsel %vm298, %v867, 0.0
  %878 = vadd.xlane.f32.xlu0 %v877
  %v879 = vpop.xlane.xlu0 %878
  %v880 = vsel %vm298, %v868, 0.0
  %881 = vadd.xlane.f32.xlu0 %v880
  %v882 = vpop.xlane.xlu0 %881
  %v883 = vsel %vm298, %v869, 0.0
  %884 = vadd.xlane.f32.xlu0 %v883
  %v885 = vpop.xlane.xlu0 %884
  %v886 = vsel %vm298, %v870, 0.0
  %887 = vadd.xlane.f32.xlu0 %v886
  %v888 = vpop.xlane.xlu0 %887
  %v889 = vsel %vm298, %v871, 0.0
  %890 = vadd.xlane.f32.xlu0 %v889
  %v891 = vpop.xlane.xlu0 %890
  %v892 = vsel %vm298, %v872, 0.0
  %893 = vadd.xlane.f32.xlu0 %v892
  %v894 = vpop.xlane.xlu0 %893
  %v895 = vsel %vm298, %v873, 0.0
  %896 = vadd.xlane.f32.xlu0 %v895
  %v897 = vpop.xlane.xlu0 %896
  %v898 = vlaneseq
  %v899 = vshrl.u32 %v898, 7
  %v900 = vsub.s32 0, %v899
  %v901 = vrot.slane %v44, %v900
  %v902 = vadd.f32 %v876, %v901
  %v903 = vadd.f32 %v879, %v901
  %v904 = vadd.f32 %v882, %v901
  %v905 = vadd.f32 %v885, %v901
  %v906 = vadd.f32 %v888, %v901
  %v907 = vadd.f32 %v891, %v901
  %v908 = vadd.f32 %v894, %v901
  %v909 = vadd.f32 %v897, %v901
  %vm910 = vcmask 7168
  %911 = vst.msk [vmem:[%s5] sm:$0xff] %vm910, %v902
  %912 = vst.msk [vmem:[%s5 + $0x8] sm:$0xff] %vm910, %v903
  %913 = vst.msk [vmem:[%s5 + $0x10] sm:$0xff] %vm910, %v904
  %914 = vst.msk [vmem:[%s5 + $0x18] sm:$0xff] %vm910, %v905
  %915 = vst.msk [vmem:[%s5 + $0x20] sm:$0xff] %vm910, %v906
  %916 = vst.msk [vmem:[%s5 + $0x28] sm:$0xff] %vm910, %v907
  %917 = vst.msk [vmem:[%s5 + $0x30] sm:$0xff] %vm910, %v908
  %918 = vst.msk [vmem:[%s5 + $0x38] sm:$0xff] %vm910, %v909
  // Predicated region
  $region22: #{fwd.1} parent=0 // pred_check
    _
  $region23: #{fwd.1} parent=0 // pred_check_branch
    %920 = sbr.rel (0) target = $region25
  $region24: #{fwd.1} parent=0 // pred_region
    _
  $region25: #{fwd.1} parent=0 // pred_fallthru
    _
  // Predicated region
  $region26: #{fwd.1} parent=0 // pred_check
    _
  $region27: #{fwd.1} parent=0 // pred_check_branch
    %922 = sbr.rel (0) target = $region29
  $region28: #{fwd.1} parent=0 // pred_region
    _
  $region29: #{fwd.1} parent=0 // pred_fallthru
    _

</llo_original>
